<compile_context>
chip_gen: v5e
topology: v5e:2x2
jax: 0.10.0
libtpu: 0.0.40
codegen_flags: <defaults>
</compile_context>

<pallas_src>
import functools
import math

import jax
import jax.numpy as jnp
from jax.experimental import pallas as pl
from jax.experimental.pallas import tpu as pltpu


# ---------------------------------------------------------------------------
# Fused kernel body
# ---------------------------------------------------------------------------
def _gating_kernel(x_ref, w1_ref, b1_ref, w2_ref, b2_ref, o_ref, *, pack):
    x = x_ref[...]                                              # [TILE_B, in]
    # linear1: x @ W1 + b1   (W1 pre-transposed to [in, 4]); f32 accumulation
    h = jnp.dot(x, w1_ref[...], preferred_element_type=jnp.float32) + b1_ref[...]
    h = jnp.maximum(h, 0.0)                                     # ReLU
    # linear2: h @ W2 + b2   (W2 pre-transposed to [4, num_experts])
    logits = jnp.dot(h, w2_ref[...], preferred_element_type=jnp.float32) + b2_ref[...]
    # numerically stable softmax; exact division (HBM-bound kernel -> the EUP
    # cycles are pure slack, exact normalization keeps sum-to-1 tight).
    m = jnp.max(logits, axis=-1, keepdims=True)
    e = jnp.exp(logits - m)
    probs = e / jnp.sum(e, axis=-1, keepdims=True)
    probs = probs.astype(o_ref.dtype)
    if pack > 1:
        # lane-dense repack: [TILE_B, E] -> [TILE_B//pack, pack*E] so the store
        # hits a 128-lane-multiple last dim (unmasked vst instead of vst.msk).
        tb, ne = probs.shape
        probs = probs.reshape(tb // pack, pack * ne)
    o_ref[...] = probs


# ---------------------------------------------------------------------------
# Tiling helpers
# ---------------------------------------------------------------------------
def _vmem_capacity_bytes():
    """Physical VMEM per TensorCore; conservative fallback if unavailable."""
    try:
        cap = int(getattr(pltpu.get_tpu_info(), "vmem_capacity_bytes"))
        if cap > 0:
            return cap
    except Exception:
        pass
    return 64 << 20  # v7x-sized fallback: safe on every generation


def _x_tile_budget_bytes(vmem_cap):
    """Per-buffer x-tile budget (pipeline double-buffers it)."""
    if vmem_cap <= (64 << 20):   # v7x-class part (64 MiB VMEM per TC)
        return 16 << 20
    return 32 << 20              # v5e / v6e (128 MiB parts)


def _pack_factor(num_experts, batch):
    """Rows packed per stored output row so the stored last dim is a multiple
    of 128 lanes. Falls back to 1 when the batch doesn't divide evenly."""
    if num_experts % 128 == 0:
        return 1
    r = 128 // math.gcd(num_experts, 128)
    if batch < r or batch % r != 0:
        return 1
    return r


def _pick_tile_b(batch, input_size, itemsize, budget_bytes, unit):
    """Rows per tile: byte-budgeted (multi-MiB), aligned to `unit`, and split
    into >=2 grid steps when the batch allows it (v7x megacore)."""
    if batch <= unit:
        return batch
    rows = budget_bytes // max(1, input_size * itemsize)
    tile = min(batch, max(unit, rows))
    if tile >= batch and batch >= 2 * unit:
        tile = batch // 2
    tile = max(unit, (tile // unit) * unit)
    return min(tile, batch)


# ---------------------------------------------------------------------------
# Wrapper
# ---------------------------------------------------------------------------
def gating_network(x, w1, b1, w2, b2, *, tile_b=None):
    """x: [B, input_size]; w1: [4, input_size]; b1: [4];
    w2: [num_experts, 4]; b2: [num_experts]   (torch nn.Linear layout)."""
    B, input_size = x.shape
    num_experts = w2.shape[0]
    dtype = x.dtype
    itemsize = jnp.dtype(dtype).itemsize
    sub = max(8, 32 // itemsize)           # sublane multiple (8 f32 / 16 bf16 / 32 i8)

    # keep the dominant HBM stream (x) and weights in x's dtype; f32 accumulation
    # happens inside the kernel.  Biases stay f32 (tiny, added post-accumulate).
    w1_t = w1.T.astype(dtype)
    w2_t = w2.T.astype(dtype)
    b1_r = b1.reshape(1, -1).astype(jnp.float32)
    b2_r = b2.reshape(1, -1).astype(jnp.float32)

    pack = _pack_factor(num_experts, B)
    unit = sub * pack if pack > 1 else sub

    vmem_cap = _vmem_capacity_bytes()
    if tile_b is None:
        tile_b = _pick_tile_b(B, input_size, itemsize,
                              _x_tile_budget_bytes(vmem_cap), unit)
    tile_b = min(tile_b, B)

    # lane-dense packing validity (in-kernel reshape + (8,128) block rule)
    if pack > 1:
        ok = (B % pack == 0) and (tile_b % pack == 0) and \
             ((tile_b // pack) % sub == 0 or tile_b == B)
        if not ok:
            pack = 1

    grid = (pl.cdiv(B, tile_b),)

    if pack > 1:
        out_shape = jax.ShapeDtypeStruct((B // pack, pack * num_experts), dtype)
        out_spec = pl.BlockSpec((tile_b // pack, pack * num_experts), lambda i: (i, 0))
    else:
        out_shape = jax.ShapeDtypeStruct((B, num_experts), dtype)
        out_spec = pl.BlockSpec((tile_b, num_experts), lambda i: (i, 0))

    # weights/biases: full blocks, same block every grid step -> VMEM-resident
    resident = lambda shape: pl.BlockSpec(shape, lambda i: (0,) * len(shape))

    # explicit scoped-VMEM limit so the multi-MiB double-buffered tiles compile
    # on every generation (v5e's default scoped limit is only 16 MiB).
    w_bytes = (w1_t.size + w2_t.size) * itemsize + (b1_r.size + b2_r.size) * 4
    need = 2 * (tile_b * input_size * itemsize
                + tile_b * num_experts * itemsize
                + w_bytes) + (4 << 20)
    vmem_limit = int(min(max(need, 32 << 20), vmem_cap - (8 << 20)))

    out = pl.pallas_call(
        functools.partial(_gating_kernel, pack=pack),
        out_shape=out_shape,
        grid=grid,
        in_specs=[
            pl.BlockSpec((tile_b, input_size), lambda i: (i, 0)),  # x: batch-tiled
            resident(w1_t.shape),
            resident(b1_r.shape),
            resident(w2_t.shape),
            resident(b2_r.shape),
        ],
        out_specs=out_spec,
        compiler_params=pltpu.CompilerParams(
            dimension_semantics=("parallel",),   # megacore sharding on v7x
            vmem_limit_bytes=vmem_limit,
        ),
    )(x, w1_t, b1_r, w2_t, b2_r)

    if pack > 1:
        out = out.reshape(B, num_experts)        # row-major unpack, free
    return out


def init_linear_params(key, in_features, out_features):
    """Deterministic init mimicking torch nn.Linear defaults (kaiming-uniform)."""
    kw, kb = jax.random.split(key)
    bound = 1.0 / math.sqrt(in_features)
    w = jax.random.uniform(kw, (out_features, in_features), jnp.float32,
                           minval=-bound, maxval=bound)
    b = jax.random.uniform(kb, (out_features,), jnp.float32,
                           minval=-bound, maxval=bound)
    return w, b


if __name__ == "__main__":
    key = jax.random.PRNGKey(0)
    k_x, k_l1, k_l2, k_x2 = jax.random.split(key, 4)

    input_size = 32
    num_experts = 4

    w1, b1 = init_linear_params(k_l1, input_size, 4)
    w2, b2 = init_linear_params(k_l2, 4, num_experts)

    def ref_fn(xv):
        h = jnp.maximum(xv @ w1.T + b1, 0.0)
        return jax.nn.softmax(h @ w2.T + b2, axis=-1)

    # 1) small smoke test (single tile, plain output layout since batch < 32)
    x = jax.random.normal(k_x, (8, input_size), jnp.float32)
    out = jax.block_until_ready(gating_network(x, w1, b1, w2, b2))
    assert out.shape == (8, num_experts)
    assert jnp.allclose(out, ref_fn(x), atol=2e-3, rtol=2e-3)
    assert jnp.allclose(jnp.sum(out, axis=-1), 1.0, atol=1e-4)

    # 2) multi-step grid + lane-dense output path (32 rows packed to 128 lanes)
    x2 = jax.random.normal(k_x2, (512, input_size), jnp.float32)
    out2 = jax.block_until_ready(gating_network(x2, w1, b1, w2, b2, tile_b=256))
    assert out2.shape == (512, num_experts)
    assert jnp.allclose(out2, ref_fn(x2), atol=2e-3, rtol=2e-3)
    assert jnp.allclose(jnp.sum(out2, axis=-1), 1.0, atol=1e-4)

    print("KERNEL_OK")
</pallas_src>

<mosaic_0001>
module attributes {stable_mosaic.version = 11 : i64} {
  func.func @_gating_kernel(%arg0: i32, %arg1: memref<8x32xf32, #tpu.memory_space<vmem>>, %arg2: memref<32x4xf32, #tpu.memory_space<vmem>>, %arg3: memref<1x4xf32, #tpu.memory_space<vmem>>, %arg4: memref<4x4xf32, #tpu.memory_space<vmem>>, %arg5: memref<1x4xf32, #tpu.memory_space<vmem>>, %arg6: memref<8x4xf32, #tpu.memory_space<vmem>>) attributes {dimension_semantics = [#tpu.dimension_semantics<parallel>], iteration_bounds = array<i64: 1>, scalar_prefetch = 0 : i64, scratch_operands = 0 : i64, tpu.core_type = #tpu.core_type<tc>, window_params = [{transform_indices = @transform_0, window_bounds = array<i64: 8, 32>}, {pipeline_mode = #tpu.pipeline_mode<synchronous>, transform_indices = @transform_1, window_bounds = array<i64: 32, 4>}, {pipeline_mode = #tpu.pipeline_mode<synchronous>, transform_indices = @transform_2, window_bounds = array<i64: 1, 4>}, {pipeline_mode = #tpu.pipeline_mode<synchronous>, transform_indices = @transform_3, window_bounds = array<i64: 4, 4>}, {pipeline_mode = #tpu.pipeline_mode<synchronous>, transform_indices = @transform_4, window_bounds = array<i64: 1, 4>}, {transform_indices = @transform_5, window_bounds = array<i64: 8, 4>}]} {
    %c0 = arith.constant 0 : index
    %c0_0 = arith.constant 0 : index
    %0 = vector.load %arg1[%c0, %c0_0] : memref<8x32xf32, #tpu.memory_space<vmem>>, vector<8x32xf32>
    %c0_1 = arith.constant 0 : index
    %c0_2 = arith.constant 0 : index
    %1 = vector.load %arg2[%c0_1, %c0_2] : memref<32x4xf32, #tpu.memory_space<vmem>>, vector<32x4xf32>
    %cst = arith.constant dense<0.000000e+00> : vector<8x4xf32>
    %2 = tpu.matmul %0, %1, %cst {dimension_numbers = #tpu.dot_dimension_numbers<[1], [0], [0], [1], [0, 0, 1, 1], [], []>} : vector<8x32xf32>, vector<32x4xf32>, vector<8x4xf32> -> vector<8x4xf32>
    %c0_3 = arith.constant 0 : index
    %c0_4 = arith.constant 0 : index
    %3 = vector.load %arg3[%c0_3, %c0_4] : memref<1x4xf32, #tpu.memory_space<vmem>>, vector<1x4xf32>
    %4 = vector.broadcast %3 : vector<1x4xf32> to vector<8x4xf32>
    %5 = arith.addf %2, %4 : vector<8x4xf32>
    %cst_5 = arith.constant 0.000000e+00 : f32
    %6 = vector.broadcast %cst_5 : f32 to vector<8x4xf32>
    %7 = arith.maximumf %5, %6 : vector<8x4xf32>
    %c0_6 = arith.constant 0 : index
    %c0_7 = arith.constant 0 : index
    %8 = vector.load %arg4[%c0_6, %c0_7] : memref<4x4xf32, #tpu.memory_space<vmem>>, vector<4x4xf32>
    %cst_8 = arith.constant dense<0.000000e+00> : vector<8x4xf32>
    %9 = tpu.matmul %7, %8, %cst_8 {dimension_numbers = #tpu.dot_dimension_numbers<[1], [0], [0], [1], [0, 0, 1, 1], [], []>} : vector<8x4xf32>, vector<4x4xf32>, vector<8x4xf32> -> vector<8x4xf32>
    %c0_9 = arith.constant 0 : index
    %c0_10 = arith.constant 0 : index
    %10 = vector.load %arg5[%c0_9, %c0_10] : memref<1x4xf32, #tpu.memory_space<vmem>>, vector<1x4xf32>
    %11 = vector.broadcast %10 : vector<1x4xf32> to vector<8x4xf32>
    %12 = arith.addf %9, %11 : vector<8x4xf32>
    %cst_11 = arith.constant dense<0xFF800000> : vector<8xf32>
    %13 = vector.multi_reduction <maximumf>, %12, %cst_11 [1] : vector<8x4xf32> to vector<8xf32>
    %14 = vector.shape_cast %13 : vector<8xf32> to vector<8x1xf32>
    %15 = vector.broadcast %14 : vector<8x1xf32> to vector<8x4xf32>
    %16 = arith.subf %12, %15 : vector<8x4xf32>
    %17 = math.exp %16 : vector<8x4xf32>
    %cst_12 = arith.constant dense<0.000000e+00> : vector<8xf32>
    %18 = vector.multi_reduction <add>, %17, %cst_12 [1] : vector<8x4xf32> to vector<8xf32>
    %19 = vector.shape_cast %18 : vector<8xf32> to vector<8x1xf32>
    %20 = vector.broadcast %19 : vector<8x1xf32> to vector<8x4xf32>
    %21 = arith.divf %17, %20 : vector<8x4xf32>
    %c0_13 = arith.constant 0 : index
    %c0_14 = arith.constant 0 : index
    %22 = vector.load %arg6[%c0_13, %c0_14] : memref<8x4xf32, #tpu.memory_space<vmem>>, vector<8x4xf32>
    tpu.vector_store %arg6[%c0_13, %c0_14], %21 {strides = array<i32>} : memref<8x4xf32, #tpu.memory_space<vmem>>, vector<8x4xf32>,
    return
  }
  func.func @transform_0(%arg0: i32) -> (i32, i32) {
    %c0_i32 = arith.constant 0 : i32
    %c0_i32_0 = arith.constant 0 : i32
    return %arg0, %c0_i32 : i32, i32
  }
  func.func @transform_1(%arg0: i32) -> (i32, i32) {
    %c0_i32 = arith.constant 0 : i32
    %c0_i32_0 = arith.constant 0 : i32
    %c0_i32_1 = arith.constant 0 : i32
    return %c0_i32, %c0_i32_0 : i32, i32
  }
  func.func @transform_2(%arg0: i32) -> (i32, i32) {
    %c0_i32 = arith.constant 0 : i32
    %c0_i32_0 = arith.constant 0 : i32
    %c0_i32_1 = arith.constant 0 : i32
    return %c0_i32, %c0_i32_0 : i32, i32
  }
  func.func @transform_3(%arg0: i32) -> (i32, i32) {
    %c0_i32 = arith.constant 0 : i32
    %c0_i32_0 = arith.constant 0 : i32
    %c0_i32_1 = arith.constant 0 : i32
    return %c0_i32, %c0_i32_0 : i32, i32
  }
  func.func @transform_4(%arg0: i32) -> (i32, i32) {
    %c0_i32 = arith.constant 0 : i32
    %c0_i32_0 = arith.constant 0 : i32
    %c0_i32_1 = arith.constant 0 : i32
    return %c0_i32, %c0_i32_0 : i32, i32
  }
  func.func @transform_5(%arg0: i32) -> (i32, i32) {
    %c0_i32 = arith.constant 0 : i32
    %c0_i32_0 = arith.constant 0 : i32
    return %arg0, %c0_i32 : i32, i32
  }
}

</mosaic_0001>

<llo_original>
// kernel: tpu_custom_call.1
$region0: #{tpu_custom_call.1}
  #allocation0 [shape = 'u32[]', space=smem, size = 0x4, offset = 0x4, fixed_abs, tag = 'smem constant byte address 0x4 - core index']
  #allocation1 [shape = 'u32[72,128]{1,0:T(1,128)}', space=vmem, size = 0x9000, scoped, tag = 'internal scratch']
  %s0 = inlined_call_operand.vmem [shape: f32[8,32], index: 0, kind: input, shape index: {}]
  %s1 = inlined_call_operand.vmem [shape: f32[32,4], index: 1, kind: input, shape index: {}]
  %s2 = inlined_call_operand.vmem [shape: f32[1,4], index: 2, kind: input, shape index: {}]
  %s3 = inlined_call_operand.vmem [shape: f32[4,4], index: 3, kind: input, shape index: {}]
  %s4 = inlined_call_operand.vmem [shape: f32[1,4], index: 4, kind: input, shape index: {}]
  %s5 = inlined_call_operand.vmem [shape: f32[8,4], index: 5, kind: output, shape index: {}]
  %s6 = sld [smem:[#allocation0]]
  $region30: #{tpu_custom_call.1} parent=0
    _
  %s8 = ssub.s32 1, %s6
  %s9 = scalar_select 0, %s8, %s6
  // Predicated region
  $region2: #{tpu_custom_call.1} parent=0 // pred_check
    _
  $region3: #{tpu_custom_call.1} parent=0 // pred_check_branch
    %11 = sbr.rel (0) target = $region5
  $region4: #{tpu_custom_call.1} parent=0 // pred_region
    _
  $region5: #{tpu_custom_call.1} parent=0 // pred_fallthru
    _
  // Predicated region
  $region6: #{tpu_custom_call.1} parent=0 // pred_check
    _
  $region7: #{tpu_custom_call.1} parent=0 // pred_check_branch
    %13 = sbr.rel (0) target = $region9
  $region8: #{tpu_custom_call.1} parent=0 // pred_region
    _
  $region9: #{tpu_custom_call.1} parent=0 // pred_fallthru
    _
  // Predicated region
  $region10: #{tpu_custom_call.1} parent=0 // pred_check
    _
  $region11: #{tpu_custom_call.1} parent=0 // pred_check_branch
    %15 = sbr.rel (0) target = $region13
  $region12: #{tpu_custom_call.1} parent=0 // pred_region
    _
  $region13: #{tpu_custom_call.1} parent=0 // pred_fallthru
    _
  // Predicated region
  $region14: #{tpu_custom_call.1} parent=0 // pred_check
    _
  $region15: #{tpu_custom_call.1} parent=0 // pred_check_branch
    %17 = sbr.rel (0) target = $region17
  $region16: #{tpu_custom_call.1} parent=0 // pred_region
    _
  $region17: #{tpu_custom_call.1} parent=0 // pred_fallthru
    _
  // Predicated region
  $region18: #{tpu_custom_call.1} parent=0 // pred_check
    _
  $region19: #{tpu_custom_call.1} parent=0 // pred_check_branch
    %19 = sbr.rel (0) target = $region21
  $region20: #{tpu_custom_call.1} parent=0 // pred_region
    _
  $region21: #{tpu_custom_call.1} parent=0 // pred_fallthru
    _
  %v20 = vld [vmem:[%s0] sm:$0xff]
  %v21 = vld [vmem:[%s1] sm:$0xff]
  %v22 = vld [vmem:[%s1 + $0x8] sm:$0xff]
  %v23 = vld [vmem:[%s1 + $0x10] sm:$0xff]
  %v24 = vld [vmem:[%s1 + $0x18] sm:$0xff]
  %v25 = vld [vmem:[%s2] sm:$0x1]
  %v27 = vperm.slane %v25, 0
  %vm29 = vcmask 261120
  %v31 = vsel %vm29, %v20, 0
  %33 = vmatpush.msra.mxu0 0.0
  %34 = vmatpush.msra.mxu0 0.0
  %35 = vmatpush.msra.mxu0 0.0
  %36 = vmatpush.msra.mxu0 0.0
  %37 = vmatpush.msra.mxu0 0.0
  %38 = vmatpush.msra.mxu0 0.0
  %39 = vmatpush.msra.mxu0 0.0
  %40 = vmatpush.msra.mxu0 0.0
  %41 = vmatpush.msra.mxu0 0.0
  %42 = vmatpush.msra.mxu0 0.0
  %43 = vmatpush.msra.mxu0 0.0
  %44 = vmatpush.msra.mxu0 0.0
  %45 = vmatpush.msra.mxu0 %v24
  %46 = vmatpush.msra.mxu0 %v23
  %47 = vmatpush.msra.mxu0 %v22
  %48 = vmatpush.msra.mxu0 %v21
  %49 = vmatmul.f32.gmra.mxu0 %v31
  %v50 = vpop.f32.mrf.mxu0
  %v51 = vadd.f32 %v27, %v50
  %52 = vdwg.mxu0
  %v53 = vmax.f32 %v51, 0.0
  %v54 = vld [vmem:[%s3] sm:$0xf]
  %v55 = vld [vmem:[%s4] sm:$0x1]
  %v57 = vperm.slane %v55, 0
  %vm59 = vcmask 31744
  %v61 = vsel %vm59, %v53, 0
  %vm63 = vcmask 1043456
  %v65 = vsel %vm63, %v54, 0
  %67 = vmatpush.msra.mxu0 0.0
  %68 = vmatpush.msra.mxu0 0.0
  %69 = vmatpush.msra.mxu0 0.0
  %70 = vmatpush.msra.mxu0 0.0
  %71 = vmatpush.msra.mxu0 0.0
  %72 = vmatpush.msra.mxu0 0.0
  %73 = vmatpush.msra.mxu0 0.0
  %74 = vmatpush.msra.mxu0 0.0
  %75 = vmatpush.msra.mxu0 0.0
  %76 = vmatpush.msra.mxu0 0.0
  %77 = vmatpush.msra.mxu0 0.0
  %78 = vmatpush.msra.mxu0 0.0
  %79 = vmatpush.msra.mxu0 0.0
  %80 = vmatpush.msra.mxu0 0.0
  %81 = vmatpush.msra.mxu0 0.0
  %82 = vmatpush.msra.mxu0 %v65
  %83 = vmatmul.f32.gmra.mxu0 %v61
  %v84 = vpop.f32.mrf.mxu0
  %v85 = vadd.f32 %v57, %v84
  %86 = vdwg.mxu0
  %v87 = vsel %vm59, %v85, -inf
  %88 = vmax.xlane.f32.xlu0 %v87
  %v89 = vpop.xlane.xlu0 %88
  %v90 = vsub.f32 %v85, %v89
  %v91 = vmul.f32 %v90, 1.442695
  %v92 = vpow.pop %v91
  %v93 = vsel %vm59, %v92, 0.0
  %94 = vadd.xlane.f32.xlu0 %v93
  %v95 = vpop.xlane.xlu0 %94
  %v96 = vrcp.pop %v95
  %v97 = vmul.f32 %v95, %v96
  %v98 = vsub.f32 1.0, %v97
  %v99 = vmul.f32 %v96, %v98
  %v100 = vadd.f32 %v96, %v99
  %vm101 = vweird.f32 %v95
  %vm102 = vweird.f32 %v96
  %vm103 = vmor %vm101, %vm102
  %v104 = vsel %vm103, %v96, %v100
  %v105 = vand.u32 2147483647, %v95
  %vm106 = vcmp.eq.f32.partialorder %v105, 8.507059e+37
  %v107 = vand.u32 %v95, 2147483648
  %v108 = vor.u32 1.1754944e-38, %v107
  %v109 = vsel %vm106, %v108, %v104
  %v110 = vmul.f32 %v92, %v109
  %111 = vst.msk [vmem:[%s5] sm:$0xff] %vm59, %v110
  // Predicated region
  $region22: #{tpu_custom_call.1} parent=0 // pred_check
    _
  $region23: #{tpu_custom_call.1} parent=0 // pred_check_branch
    %113 = sbr.rel (0) target = $region25
  $region24: #{tpu_custom_call.1} parent=0 // pred_region
    _
  $region25: #{tpu_custom_call.1} parent=0 // pred_fallthru
    _
  // Predicated region
  $region26: #{tpu_custom_call.1} parent=0 // pred_check
    _
  $region27: #{tpu_custom_call.1} parent=0 // pred_check_branch
    %115 = sbr.rel (0) target = $region29
  $region28: #{tpu_custom_call.1} parent=0 // pred_region
    _
  $region29: #{tpu_custom_call.1} parent=0 // pred_fallthru
    _

</llo_original>
